<compile_context>
chip_gen: v5e
topology: v5e:2x2
jax: 0.10.0
libtpu: 0.0.40
codegen_flags: <defaults>
</compile_context>

<pallas_src>
import functools

import jax
import jax.numpy as jnp
import numpy as np
from jax.experimental import pallas as pl
from jax.experimental.pallas import tpu as pltpu


def _round_up(x, m):
    return (x + m - 1) // m * m


def _tpu_vmem_capacity_bytes():
    """Physical VMEM per core; conservative default (v7x-like) if query fails."""
    try:
        return int(pltpu.get_tpu_info().vmem_capacity_bytes)
    except Exception:
        return 64 << 20


def _adain_kernel(x_ref, wb_ref, o_ref, *, eps: float, inv_hw: float):
    # x_ref : (row_block, hw)   tile of instances x full spatial extent
    # wb_ref: (row_block, 2)    matching per-instance [weight, bias] slice (f32)
    x = x_ref[...].astype(jnp.float32)
    w = wb_ref[:, 0:1]
    b = wb_ref[:, 1:2]

    # Two-pass mean / biased variance (matches F.batch_norm(training=True)
    # numerically; avoids E[x^2]-E[x]^2 cancellation). Extra VPU/XLU work is
    # hidden under the HBM stream.
    mean = jnp.sum(x, axis=1, keepdims=True) * inv_hw
    xc = x - mean
    var = jnp.sum(xc * xc, axis=1, keepdims=True) * inv_hw
    inv = jax.lax.rsqrt(var + eps)

    o_ref[...] = (xc * (inv * w) + b).astype(o_ref.dtype)


def _choose_row_block(bc, hw, itemsize, sublane_mult, target_tile_bytes):
    """Largest sublane-aligned row tile near target_tile_bytes of x per step,
    keeping >= 4 grid steps when there is enough work (pipelining + megacore)."""
    bc_m = _round_up(bc, sublane_mult)
    bytes_per_row = max(1, _round_up(hw, 128) * itemsize)
    rows = (target_tile_bytes // bytes_per_row) // sublane_mult * sublane_mult
    rows = max(sublane_mult, rows)
    rows = min(rows, bc_m)
    min_steps = 4
    if bc_m // rows < min_steps:
        rows = max(sublane_mult, (bc_m // min_steps) // sublane_mult * sublane_mult)
    return rows


def adaptive_instance_norm_2d(x, weight, bias, *, eps: float = 1e-5):
    """x: (B, C, H, W); weight, bias: (B*C,). Returns (B, C, H, W)."""
    b, c, h, w = x.shape
    bc, hw = b * c, h * w
    itemsize = jnp.dtype(x.dtype).itemsize
    sublane_mult = 8 * max(1, 4 // itemsize)  # 8 for f32, 16 for bf16, 32 for i8/fp8

    vmem_cap = _tpu_vmem_capacity_bytes()
    big_vmem = vmem_cap >= (96 << 20)           # v5e / v6e (128 MiB physical)
    target_tile_bytes = (8 << 20) if big_vmem else (4 << 20)
    vmem_cap_limit = (96 << 20) if big_vmem else (48 << 20)

    row_block = _choose_row_block(bc, hw, itemsize, sublane_mult, target_tile_bytes)
    grid = (pl.cdiv(bc, row_block),)            # ragged last block handled by Pallas

    x2 = x.reshape(bc, hw)                      # metadata-only reshape; no padding
    wb = jnp.stack(
        [jnp.reshape(weight, (bc,)).astype(jnp.float32),
         jnp.reshape(bias, (bc,)).astype(jnp.float32)],
        axis=1,
    )                                           # (bc, 2), no padding

    # VMEM budget (lane-padded): x in + out double-buffered + per-step wb slice.
    hw_lanes = _round_up(hw, 128)
    x_tile_bytes = row_block * hw_lanes * itemsize
    wb_tile_bytes = row_block * 128 * 4         # lane dim 2 pads to 128 lanes
    need = 2 * (2 * x_tile_bytes) + 2 * wb_tile_bytes + (2 << 20)
    vmem_limit = int(min(vmem_cap_limit, max(need, 16 << 20)))

    kernel = functools.partial(_adain_kernel, eps=float(eps), inv_hw=1.0 / float(hw))

    cost = pl.CostEstimate(
        flops=6 * bc * hw,
        transcendentals=bc,                      # one rsqrt per instance
        bytes_accessed=2 * bc * hw * itemsize + bc * 2 * 4,
    )

    out2 = pl.pallas_call(
        kernel,
        out_shape=jax.ShapeDtypeStruct((bc, hw), x.dtype),
        grid=grid,
        in_specs=[
            pl.BlockSpec((row_block, hw), lambda i: (i, 0)),
            pl.BlockSpec((row_block, 2), lambda i: (i, 0)),
        ],
        out_specs=pl.BlockSpec((row_block, hw), lambda i: (i, 0)),
        compiler_params=pltpu.CompilerParams(
            dimension_semantics=("parallel",),
            vmem_limit_bytes=vmem_limit,
        ),
        cost_estimate=cost,
    )(x2, wb)

    return out2.reshape(b, c, h, w)


def _reference(x, weight, bias, eps=1e-5):
    # Pure-JAX reference matching F.batch_norm(view(1, B*C, H, W), training=True).
    b, c, h, w = x.shape
    x2 = x.reshape(b * c, h * w).astype(jnp.float32)
    mean = jnp.mean(x2, axis=1, keepdims=True)
    var = jnp.mean((x2 - mean) ** 2, axis=1, keepdims=True)
    out = (x2 - mean) / jnp.sqrt(var + eps)
    out = out * weight.reshape(-1, 1).astype(jnp.float32) \
              + bias.reshape(-1, 1).astype(jnp.float32)
    return out.reshape(b, c, h, w).astype(x.dtype)


def _run_case(key, B, C, H, W, dtype=jnp.float32, rtol=1e-5, atol=1e-5, eps=1e-5):
    kx, kw, kb = jax.random.split(key, 3)
    x = jax.random.normal(kx, (B, C, H, W), dtype=jnp.float32).astype(dtype)
    weight = jax.random.normal(kw, (B * C,), dtype=jnp.float32) * 0.5 + 1.0
    bias = jax.random.normal(kb, (B * C,), dtype=jnp.float32) * 0.1

    out = adaptive_instance_norm_2d(x, weight, bias, eps=eps)
    out = jax.block_until_ready(out)
    ref = _reference(x, weight, bias, eps=eps)
    np.testing.assert_allclose(np.asarray(out, dtype=np.float32),
                               np.asarray(ref, dtype=np.float32),
                               rtol=rtol, atol=atol)


if __name__ == "__main__":
    key = jax.random.PRNGKey(0)
    k1, k2, k3, k4, k5 = jax.random.split(key, 5)

    # Small shape consistent with the module (B=2, C=4, 16x16 feature map).
    _run_case(k1, 2, 4, 16, 16)
    # B*C smaller than one sublane tile -> single ragged block, no host padding.
    _run_case(k2, 1, 3, 16, 16)
    # Multi-step grid with B*C a multiple of the tile.
    _run_case(k3, 2, 64, 16, 16)
    # Multi-step grid with a ragged last block (bc % row_block != 0).
    _run_case(k4, 2, 50, 16, 16)
    # bf16 input exercises the sublane-packing-aware row_block (multiple of 16).
    _run_case(k5, 2, 4, 16, 16, dtype=jnp.bfloat16, rtol=2e-2, atol=2e-2)

    print("KERNEL_OK")
</pallas_src>

<mosaic_0001>
module attributes {stable_mosaic.version = 11 : i64} {
  func.func @_adain_kernel(%arg0: i32, %arg1: memref<8x256xf32, #tpu.memory_space<vmem>>, %arg2: memref<8x2xf32, #tpu.memory_space<vmem>>, %arg3: memref<8x256xf32, #tpu.memory_space<vmem>>) attributes {dimension_semantics = [#tpu.dimension_semantics<parallel>], iteration_bounds = array<i64: 1>, scalar_prefetch = 0 : i64, scratch_operands = 0 : i64, tpu.core_type = #tpu.core_type<tc>, window_params = [{transform_indices = @transform_0, window_bounds = array<i64: 8, 256>}, {transform_indices = @transform_1, window_bounds = array<i64: 8, 2>}, {transform_indices = @transform_2, window_bounds = array<i64: 8, 256>}]} {
    %c0 = arith.constant 0 : index
    %c0_0 = arith.constant 0 : index
    %0 = vector.load %arg1[%c0, %c0_0] : memref<8x256xf32, #tpu.memory_space<vmem>>, vector<8x256xf32>
    %c0_1 = arith.constant 0 : index
    %c0_2 = arith.constant 0 : index
    %1 = vector.load %arg2[%c0_1, %c0_2] : memref<8x2xf32, #tpu.memory_space<vmem>>, vector<8x1xf32>
    %c0_3 = arith.constant 0 : index
    %c1 = arith.constant 1 : index
    %2 = vector.load %arg2[%c0_3, %c1] : memref<8x2xf32, #tpu.memory_space<vmem>>, vector<8x1xf32>
    %cst = arith.constant dense<0.000000e+00> : vector<8xf32>
    %3 = vector.multi_reduction <add>, %0, %cst [1] : vector<8x256xf32> to vector<8xf32>
    %4 = vector.shape_cast %3 : vector<8xf32> to vector<8x1xf32>
    %cst_4 = arith.constant 3.906250e-03 : f32
    %5 = vector.broadcast %cst_4 : f32 to vector<8x1xf32>
    %6 = arith.mulf %4, %5 : vector<8x1xf32>
    %7 = vector.broadcast %6 : vector<8x1xf32> to vector<8x256xf32>
    %8 = arith.subf %0, %7 : vector<8x256xf32>
    %9 = arith.mulf %8, %8 : vector<8x256xf32>
    %cst_5 = arith.constant dense<0.000000e+00> : vector<8xf32>
    %10 = vector.multi_reduction <add>, %9, %cst_5 [1] : vector<8x256xf32> to vector<8xf32>
    %11 = vector.shape_cast %10 : vector<8xf32> to vector<8x1xf32>
    %cst_6 = arith.constant 3.906250e-03 : f32
    %12 = vector.broadcast %cst_6 : f32 to vector<8x1xf32>
    %13 = arith.mulf %11, %12 : vector<8x1xf32>
    %cst_7 = arith.constant 9.99999974E-6 : f32
    %14 = vector.broadcast %cst_7 : f32 to vector<8x1xf32>
    %15 = arith.addf %13, %14 : vector<8x1xf32>
    %16 = math.rsqrt %15 : vector<8x1xf32>
    %17 = arith.mulf %16, %1 : vector<8x1xf32>
    %18 = vector.broadcast %17 : vector<8x1xf32> to vector<8x256xf32>
    %19 = arith.mulf %8, %18 : vector<8x256xf32>
    %20 = vector.broadcast %2 : vector<8x1xf32> to vector<8x256xf32>
    %21 = arith.addf %19, %20 : vector<8x256xf32>
    %c0_8 = arith.constant 0 : index
    %c0_9 = arith.constant 0 : index
    %22 = vector.load %arg3[%c0_8, %c0_9] : memref<8x256xf32, #tpu.memory_space<vmem>>, vector<8x256xf32>
    tpu.vector_store %arg3[%c0_8, %c0_9], %21 {strides = array<i32>} : memref<8x256xf32, #tpu.memory_space<vmem>>, vector<8x256xf32>,
    return
  }
  func.func @transform_0(%arg0: i32) -> (i32, i32) {
    %c0_i32 = arith.constant 0 : i32
    %c0_i32_0 = arith.constant 0 : i32
    return %arg0, %c0_i32 : i32, i32
  }
  func.func @transform_1(%arg0: i32) -> (i32, i32) {
    %c0_i32 = arith.constant 0 : i32
    %c0_i32_0 = arith.constant 0 : i32
    return %arg0, %c0_i32 : i32, i32
  }
  func.func @transform_2(%arg0: i32) -> (i32, i32) {
    %c0_i32 = arith.constant 0 : i32
    %c0_i32_0 = arith.constant 0 : i32
    return %arg0, %c0_i32 : i32, i32
  }
}

</mosaic_0001>

<llo_original>
// kernel: tpu_custom_call.1
$region0: #{tpu_custom_call.1}
  #allocation0 [shape = 'u32[]', space=smem, size = 0x4, offset = 0x4, fixed_abs, tag = 'smem constant byte address 0x4 - core index']
  #allocation1 [shape = 'u32[72,128]{1,0:T(1,128)}', space=vmem, size = 0x9000, scoped, tag = 'internal scratch']
  %s0 = inlined_call_operand.hbm [shape: f32[8,256], index: 0, kind: input, shape index: {}]
  %s1 = inlined_call_operand.vmem [shape: f32[8,2], index: 1, kind: input, shape index: {}]
  %s2 = inlined_call_operand.hbm [shape: f32[8,256], index: 2, kind: output, shape index: {}]
  %s3 = sld [smem:[#allocation0]]
  $region22: #{tpu_custom_call.1} parent=0
    _
  %s5 = ssub.s32 1, %s3
  %s6 = scalar_select 0, %s5, %s3
  $region1: #{tpu_custom_call.1} parent=0
    #allocation2 [shape = 'u8[8192]{0}', space=vmem, size = 0x2000, scoped, tag = 'input window, operand 0, single buffered']
    #allocation3 [shape = 's32[1]{0}', space=sflag, size = 0x4, scoped, tag = 'scoped memory for tpu_custom_call.1']
    #allocation4 [shape = 's32[1]{0}', space=sflag, size = 0x4, scoped, tag = 'scoped memory for tpu_custom_call.1']
    #allocation5 [shape = 'u8[8192]{0}', space=vmem, size = 0x2000, scoped, tag = 'output window, operand 0, single buffered']
    %7 = vsyncpa [#allocation3], 0
    %8 = vsyncpa [#allocation4], 0
    // Predicated region
    $region2: #{tpu_custom_call.1} parent=1 // pred_check
      _
    $region3: #{tpu_custom_call.1} parent=1 // pred_check_branch
      %10 = sbr.rel (0) target = $region5
    $region4: #{tpu_custom_call.1} parent=1 // pred_region
      %12 = vsyncadd [#allocation3], 0
      %s14 = sshll.u32 %s0, 4
      %s15 = int_to_ptr.hbm [resolvable:$true] %s14
      %s16 = sshll.u32 [#allocation2], 4
      %s17 = int_to_ptr.vmem [resolvable:$true] %s16
      %19 = dma.hbm_to_vmem [thread:$0]  %s15, 256, %s17, [#allocation3]
    $region5: #{tpu_custom_call.1} parent=1 // pred_fallthru
      _
    // Predicated region
    $region6: #{tpu_custom_call.1} parent=1 // pred_check
      _
    $region7: #{tpu_custom_call.1} parent=1 // pred_check_branch
      %21 = sbr.rel (0) target = $region9
    $region8: #{tpu_custom_call.1} parent=1 // pred_region
      _
    $region9: #{tpu_custom_call.1} parent=1 // pred_fallthru
      _
    // Predicated region
    $region10: #{tpu_custom_call.1} parent=1 // pred_check
      _
    $region11: #{tpu_custom_call.1} parent=1 // pred_check_branch
      %23 = sbr.rel (0) target = $region13
    $region12: #{tpu_custom_call.1} parent=1 // pred_region
      %25 = dma.done [#allocation3], 256
    $region13: #{tpu_custom_call.1} parent=1 // pred_fallthru
      _
    %v26 = vld [vmem:[#allocation2] sm:$0xff]
    %v27 = vld [vmem:[#allocation2 + $0x8] sm:$0xff]
    %v28 = vld [vmem:[%s1] sm:$0xff]
    %v29 = vadd.f32 %v26, %v27
    %30 = vadd.xlane.f32.xlu0 %v29
    %v31 = vpop.xlane.xlu0 %30
    %v32 = vmul.f32 %v31, 0.00390625
    %v33 = vsub.f32 %v26, %v32
    %v34 = vsub.f32 %v27, %v32
    %v35 = vmul.f32 %v33, %v33
    %v36 = vmul.f32 %v34, %v34
    %v37 = vadd.f32 %v35, %v36
    %38 = vadd.xlane.f32.xlu0 %v37
    %v39 = vpop.xlane.xlu0 %38
    %v40 = vmul.f32 %v39, 0.00390625
    %v41 = vadd.f32 %v40, 1e-05
    %v42 = vrsqrt.pop %v41
    %v43 = vmul.f32 %v42, %v41
    %v44 = vmul.f32 %v43, %v42
    %v45 = vmul.f32 0.5, %v44
    %v46 = vsub.f32 1.5, %v45
    %v47 = vmul.f32 %v42, %v46
    %vm48 = vweird.f32 %v41
    %vm49 = vweird.f32 %v42
    %vm50 = vmor %vm48, %vm49
    %v51 = vsel %vm50, %v42, %v47
    %v52 = vmul.f32 %v51, %v28
    %54 = vset.pattern.permute.xlu0 0
    %55 = vperm.xlu0 %54, %v52
    %v56 = vpop.permute.xlu0 %55
    %v58 = vmul.f32 %v33, %v56
    %v59 = vmul.f32 %v34, %v56
    %61 = vset.pattern.permute.xlu0 1
    %62 = vperm.xlu0 %61, %v28
    %v63 = vpop.permute.xlu0 %62
    %v65 = vadd.f32 %v58, %v63
    %v66 = vadd.f32 %v59, %v63
    %67 = vst [vmem:[#allocation5] sm:$0xff] %v65
    %68 = vst [vmem:[#allocation5 + $0x8] sm:$0xff] %v66
    // Predicated region
    $region14: #{tpu_custom_call.1} parent=1 // pred_check
      _
    $region15: #{tpu_custom_call.1} parent=1 // pred_check_branch
      %70 = sbr.rel (0) target = $region17
    $region16: #{tpu_custom_call.1} parent=1 // pred_region
      %72 = vsyncadd [#allocation4], 0
      %s74 = sshll.u32 [#allocation5], 4
      %s75 = int_to_ptr.vmem [resolvable:$true] %s74
      %s76 = sshll.u32 %s2, 4
      %s77 = int_to_ptr.hbm [resolvable:$true] %s76
      %79 = dma.vmem_to_hbm [thread:$0]  %s75, 256, %s77, [#allocation4]
    $region17: #{tpu_custom_call.1} parent=1 // pred_fallthru
      _
    // Predicated region
    $region18: #{tpu_custom_call.1} parent=1 // pred_check
      _
    $region19: #{tpu_custom_call.1} parent=1 // pred_check_branch
      %81 = sbr.rel (0) target = $region21
    $region20: #{tpu_custom_call.1} parent=1 // pred_region
      %83 = dma.done [#allocation4], 256
    $region21: #{tpu_custom_call.1} parent=1 // pred_fallthru
      _
    %84 = vsyncpa [#allocation3], 1
    %85 = vsyncpa [#allocation4], 1

</llo_original>
